<compile_context>
chip_gen: v7x
topology: tpu7x:2x2x1
jax: 0.10.0
libtpu: 0.0.40
codegen_flags: <defaults>
</compile_context>

<pallas_src>
import jax
import jax.numpy as jnp
from jax import lax
from jax.experimental import pallas as pl
from jax.experimental.pallas import tpu as pltpu


_NEG_SLOPE = 0.01  # torch.nn.LeakyReLU() default negative_slope


def _leaky_relu(x, negative_slope=_NEG_SLOPE):
    return jnp.where(x > 0, x, negative_slope * x)


def _round_up(n, m):
    return ((n + m - 1) // m) * m


def _prep_params(params):
    """PyTorch-convention params -> kernel operands (f32, 8-sublane aligned)."""
    w1 = params["w1"].astype(jnp.float32)                                   # (8, 5)
    w2 = params["w2"].astype(jnp.float32)                                   # (8, 8)
    w3 = jnp.zeros((8, 8), jnp.float32).at[0:2, :].set(
        params["w3"].astype(jnp.float32))                                   # (8, 8), rows 2:8 zero
    b1 = params["b1"].astype(jnp.float32).reshape(8, 1)
    b2 = params["b2"].astype(jnp.float32).reshape(8, 1)
    b3 = jnp.zeros((8, 1), jnp.float32).at[0:2, 0].set(
        params["b3"].astype(jnp.float32))                                   # (8, 1)
    return w1, w2, w3, b1, b2, b3


def simple_nn_kernel(x_ref, w1_ref, w2_ref, w3_ref, b1_ref, b2_ref, b3_ref, o_ref):
    # x_ref : (5, TB)  features on sublanes, batch on lanes (lane-dense)
    # w*_ref: (8,5)/(8,8)/(8,8)  VMEM-resident (constant index_map)
    # b*_ref: (8,1)              broadcast along lanes
    # o_ref : (2, TB)  lane-dense output block
    x = x_ref[...]

    h1 = jnp.dot(w1_ref[...], x, preferred_element_type=jnp.float32) + b1_ref[...]
    h1 = _leaky_relu(h1)                                                    # (8, TB)

    h2 = jnp.dot(w2_ref[...], h1, preferred_element_type=jnp.float32) + b2_ref[...]
    h2 = _leaky_relu(h2)                                                    # (8, TB)

    out8 = jnp.dot(w3_ref[...], h2, preferred_element_type=jnp.float32) + b3_ref[...]
    o_ref[...] = out8[0:2, :].astype(o_ref.dtype)                           # (2, TB)


def _mlp_jnp(x, params):
    """Fused jnp path (small-batch fast path and correctness reference)."""
    hp = lax.Precision.HIGHEST
    h1 = _leaky_relu(jnp.dot(x, params["w1"].T, precision=hp) + params["b1"])
    h2 = _leaky_relu(jnp.dot(h1, params["w2"].T, precision=hp) + params["b2"])
    return jnp.dot(h2, params["w3"].T, precision=hp) + params["b3"]


def simple_nn_forward(x, params, *, tb_max=65536, min_pallas_batch=4096,
                      force_pallas=False):
    """Forward pass matching SimpleNN.forward.

    x      : (B, 5) float32 (PyTorch batch-major convention)
    params : dict with w1 (8,5), b1 (8,), w2 (8,8), b2 (8,), w3 (2,8), b3 (2,)
             (PyTorch nn.Linear (out, in) weight convention)
    returns: (B, 2) float32
    """
    B, F = x.shape
    assert F == 5, f"expected 5 input features, got {F}"
    x = x.astype(jnp.float32)

    # Small-batch fast path: fixed pallas_call + layout cost dominates there.
    if B < min_pallas_batch and not force_pallas:
        return _mlp_jnp(x, params)

    # Tile derivation: pick num_tiles first (>=2 so both v7x TCs get work),
    # then tb, so padding waste is bounded by ~128 * num_tiles rows.
    tb_max = max(128, _round_up(tb_max, 128))
    min_tiles = 2 if B >= 256 else 1
    num_tiles = max(min_tiles, pl.cdiv(B, tb_max))
    tb = _round_up(pl.cdiv(B, num_tiles), 128)
    B_pad = num_tiles * tb

    # Layout plumbing: batch onto lanes (+ tiny tail pad).  Single dense
    # full-bandwidth XLA pass; see header comment for why we keep it.
    x_t = jnp.transpose(x)                                   # (5, B)
    if B_pad != B:
        x_t = jnp.pad(x_t, ((0, 0), (0, B_pad - B)))         # (5, B_pad)

    w1, w2, w3, b1, b2, b3 = _prep_params(params)

    const = lambda i: (0, 0)
    grid_spec = pltpu.PrefetchScalarGridSpec(
        num_scalar_prefetch=0,
        grid=(num_tiles,),
        in_specs=[
            pl.BlockSpec((5, tb), lambda i: (0, i)),          # x tile (lane-dense)
            pl.BlockSpec((8, 5), const),                      # w1, resident
            pl.BlockSpec((8, 8), const),                      # w2, resident
            pl.BlockSpec((8, 8), const),                      # w3 (zero-padded), resident
            pl.BlockSpec((8, 1), const),                      # b1
            pl.BlockSpec((8, 1), const),                      # b2
            pl.BlockSpec((8, 1), const),                      # b3 (zero-padded)
        ],
        out_specs=pl.BlockSpec((2, tb), lambda i: (0, i)),    # lane-dense output
    )

    cost = pl.CostEstimate(
        flops=2 * (5 * 8 + 8 * 8 + 8 * 2) * B_pad,            # ~240 flops / row
        transcendentals=0,
        bytes_accessed=(5 + 2) * 4 * B_pad + 4 * (40 + 64 + 64 + 24),
    )

    out_t = pl.pallas_call(
        simple_nn_kernel,
        out_shape=jax.ShapeDtypeStruct((2, B_pad), jnp.float32),
        grid_spec=grid_spec,
        compiler_params=pltpu.CompilerParams(
            dimension_semantics=("parallel",),                # shards across TCs on v7x
            vmem_limit_bytes=40 * 1024 * 1024,                # >= v5e 16 MiB default,
        ),                                                    # <= v7x 64 MiB physical
        cost_estimate=cost,
    )(x_t, w1, w2, w3, b1, b2, b3)

    return jnp.transpose(out_t[:, :B])                        # (B, 2)


def init_params(key):
    """Matches SimpleNN._initialize_weights: W ~ N(0, 0.01), b = 0 (PyTorch (out,in))."""
    k1, k2, k3 = jax.random.split(key, 3)
    std = 0.01
    return {
        "w1": std * jax.random.normal(k1, (8, 5), dtype=jnp.float32),
        "b1": jnp.zeros((8,), dtype=jnp.float32),
        "w2": std * jax.random.normal(k2, (8, 8), dtype=jnp.float32),
        "b2": jnp.zeros((8,), dtype=jnp.float32),
        "w3": std * jax.random.normal(k3, (2, 8), dtype=jnp.float32),
        "b3": jnp.zeros((2,), dtype=jnp.float32),
    }


def reference_forward(x, params):
    return _mlp_jnp(x.astype(jnp.float32), params)


# TODO(synk): l2_regularization_loss is a training-time scalar regularizer, not
# part of the forward pass; it is intentionally not ported to a kernel.


if __name__ == "__main__":
    key = jax.random.PRNGKey(0)
    kp, k1, k2, k3 = jax.random.split(key, 4)
    params = init_params(kp)

    # 1) Tiny batch -> small-batch fast path (no pallas_call).
    xa = jax.random.normal(k1, (8, 5), dtype=jnp.float32)
    outa = jax.block_until_ready(simple_nn_forward(xa, params))
    assert outa.shape == (8, 2)
    assert jnp.allclose(outa, reference_forward(xa, params), atol=1e-5, rtol=1e-5)

    # 2) Force the Pallas path on a small, non-divisible batch to exercise
    #    multi-tile execution and the bounded tail padding (3 tiles of 128).
    xb = jax.random.normal(k2, (300, 5), dtype=jnp.float32)
    outb = jax.block_until_ready(
        simple_nn_forward(xb, params, tb_max=128, force_pallas=True))
    assert outb.shape == (300, 2)
    assert jnp.allclose(outb, reference_forward(xb, params), atol=2e-5, rtol=1e-4)

    # 3) Batch above the threshold takes the Pallas path naturally (2 tiles,
    #    tb derived from B, padding bounded by ~128 * num_tiles rows).
    xc = jax.random.normal(k3, (4099, 5), dtype=jnp.float32)
    outc = jax.block_until_ready(simple_nn_forward(xc, params))
    assert outc.shape == (4099, 2)
    assert jnp.allclose(outc, reference_forward(xc, params), atol=2e-5, rtol=1e-4)

    print("KERNEL_OK")
</pallas_src>

<mosaic_0001>
module attributes {stable_mosaic.version = 11 : i64} {
  func.func @simple_nn_kernel(%arg0: i32, %arg1: memref<5x128xf32, #tpu.memory_space<vmem>>, %arg2: memref<8x5xf32, #tpu.memory_space<vmem>>, %arg3: memref<8x8xf32, #tpu.memory_space<vmem>>, %arg4: memref<8x8xf32, #tpu.memory_space<vmem>>, %arg5: memref<8x1xf32, #tpu.memory_space<vmem>>, %arg6: memref<8x1xf32, #tpu.memory_space<vmem>>, %arg7: memref<8x1xf32, #tpu.memory_space<vmem>>, %arg8: memref<2x128xf32, #tpu.memory_space<vmem>>) attributes {dimension_semantics = [#tpu.dimension_semantics<parallel>], iteration_bounds = array<i64: 3>, scalar_prefetch = 0 : i64, scratch_operands = 0 : i64, tpu.core_type = #tpu.core_type<tc>, window_params = [{transform_indices = @transform_0, window_bounds = array<i64: 5, 128>}, {pipeline_mode = #tpu.pipeline_mode<synchronous>, transform_indices = @transform_1, window_bounds = array<i64: 8, 5>}, {pipeline_mode = #tpu.pipeline_mode<synchronous>, transform_indices = @transform_2, window_bounds = array<i64: 8, 8>}, {pipeline_mode = #tpu.pipeline_mode<synchronous>, transform_indices = @transform_3, window_bounds = array<i64: 8, 8>}, {pipeline_mode = #tpu.pipeline_mode<synchronous>, transform_indices = @transform_4, window_bounds = array<i64: 8, 1>}, {pipeline_mode = #tpu.pipeline_mode<synchronous>, transform_indices = @transform_5, window_bounds = array<i64: 8, 1>}, {pipeline_mode = #tpu.pipeline_mode<synchronous>, transform_indices = @transform_6, window_bounds = array<i64: 8, 1>}, {transform_indices = @transform_7, window_bounds = array<i64: 2, 128>}]} {
    %c0 = arith.constant 0 : index
    %c0_0 = arith.constant 0 : index
    %0 = vector.load %arg1[%c0, %c0_0] : memref<5x128xf32, #tpu.memory_space<vmem>>, vector<5x128xf32>
    %c0_1 = arith.constant 0 : index
    %c0_2 = arith.constant 0 : index
    %1 = vector.load %arg2[%c0_1, %c0_2] : memref<8x5xf32, #tpu.memory_space<vmem>>, vector<8x5xf32>
    %cst = arith.constant dense<0.000000e+00> : vector<8x128xf32>
    %2 = tpu.matmul %1, %0, %cst {dimension_numbers = #tpu.dot_dimension_numbers<[1], [0], [0], [1], [0, 0, 1, 1], [], []>} : vector<8x5xf32>, vector<5x128xf32>, vector<8x128xf32> -> vector<8x128xf32>
    %c0_3 = arith.constant 0 : index
    %c0_4 = arith.constant 0 : index
    %3 = vector.load %arg5[%c0_3, %c0_4] : memref<8x1xf32, #tpu.memory_space<vmem>>, vector<8x1xf32>
    %4 = vector.broadcast %3 : vector<8x1xf32> to vector<8x128xf32>
    %5 = arith.addf %2, %4 : vector<8x128xf32>
    %cst_5 = arith.constant 0.000000e+00 : f32
    %6 = vector.broadcast %cst_5 : f32 to vector<8x128xf32>
    %7 = arith.cmpf ogt, %5, %6 : vector<8x128xf32>
    %cst_6 = arith.constant 0.00999999977 : f32
    %8 = vector.broadcast %cst_6 : f32 to vector<8x128xf32>
    %9 = arith.mulf %8, %5 : vector<8x128xf32>
    %10 = arith.select %7, %5, %9 : vector<8x128xi1>, vector<8x128xf32>
    %c0_7 = arith.constant 0 : index
    %c0_8 = arith.constant 0 : index
    %11 = vector.load %arg3[%c0_7, %c0_8] : memref<8x8xf32, #tpu.memory_space<vmem>>, vector<8x8xf32>
    %cst_9 = arith.constant dense<0.000000e+00> : vector<8x128xf32>
    %12 = tpu.matmul %11, %10, %cst_9 {dimension_numbers = #tpu.dot_dimension_numbers<[1], [0], [0], [1], [0, 0, 1, 1], [], []>} : vector<8x8xf32>, vector<8x128xf32>, vector<8x128xf32> -> vector<8x128xf32>
    %c0_10 = arith.constant 0 : index
    %c0_11 = arith.constant 0 : index
    %13 = vector.load %arg6[%c0_10, %c0_11] : memref<8x1xf32, #tpu.memory_space<vmem>>, vector<8x1xf32>
    %14 = vector.broadcast %13 : vector<8x1xf32> to vector<8x128xf32>
    %15 = arith.addf %12, %14 : vector<8x128xf32>
    %cst_12 = arith.constant 0.000000e+00 : f32
    %16 = vector.broadcast %cst_12 : f32 to vector<8x128xf32>
    %17 = arith.cmpf ogt, %15, %16 : vector<8x128xf32>
    %cst_13 = arith.constant 0.00999999977 : f32
    %18 = vector.broadcast %cst_13 : f32 to vector<8x128xf32>
    %19 = arith.mulf %18, %15 : vector<8x128xf32>
    %20 = arith.select %17, %15, %19 : vector<8x128xi1>, vector<8x128xf32>
    %c0_14 = arith.constant 0 : index
    %c0_15 = arith.constant 0 : index
    %21 = vector.load %arg4[%c0_14, %c0_15] : memref<8x8xf32, #tpu.memory_space<vmem>>, vector<8x8xf32>
    %cst_16 = arith.constant dense<0.000000e+00> : vector<8x128xf32>
    %22 = tpu.matmul %21, %20, %cst_16 {dimension_numbers = #tpu.dot_dimension_numbers<[1], [0], [0], [1], [0, 0, 1, 1], [], []>} : vector<8x8xf32>, vector<8x128xf32>, vector<8x128xf32> -> vector<8x128xf32>
    %c0_17 = arith.constant 0 : index
    %c0_18 = arith.constant 0 : index
    %23 = vector.load %arg7[%c0_17, %c0_18] : memref<8x1xf32, #tpu.memory_space<vmem>>, vector<8x1xf32>
    %24 = vector.broadcast %23 : vector<8x1xf32> to vector<8x128xf32>
    %25 = arith.addf %22, %24 : vector<8x128xf32>
    %26 = vector.extract_strided_slice %25 {offsets = [0, 0], sizes = [2, 128], strides = [1, 1]} : vector<8x128xf32> to vector<2x128xf32>
    %c0_19 = arith.constant 0 : index
    %c0_20 = arith.constant 0 : index
    %27 = vector.load %arg8[%c0_19, %c0_20] : memref<2x128xf32, #tpu.memory_space<vmem>>, vector<2x128xf32>
    tpu.vector_store %arg8[%c0_19, %c0_20], %26 {strides = array<i32>} : memref<2x128xf32, #tpu.memory_space<vmem>>, vector<2x128xf32>,
    return
  }
  func.func @transform_0(%arg0: i32) -> (i32, i32) {
    %c0_i32 = arith.constant 0 : i32
    %c0_i32_0 = arith.constant 0 : i32
    return %c0_i32, %arg0 : i32, i32
  }
  func.func @transform_1(%arg0: i32) -> (i32, i32) {
    %c0_i32 = arith.constant 0 : i32
    %c0_i32_0 = arith.constant 0 : i32
    %c0_i32_1 = arith.constant 0 : i32
    return %c0_i32, %c0_i32_0 : i32, i32
  }
  func.func @transform_2(%arg0: i32) -> (i32, i32) {
    %c0_i32 = arith.constant 0 : i32
    %c0_i32_0 = arith.constant 0 : i32
    %c0_i32_1 = arith.constant 0 : i32
    return %c0_i32, %c0_i32_0 : i32, i32
  }
  func.func @transform_3(%arg0: i32) -> (i32, i32) {
    %c0_i32 = arith.constant 0 : i32
    %c0_i32_0 = arith.constant 0 : i32
    %c0_i32_1 = arith.constant 0 : i32
    return %c0_i32, %c0_i32_0 : i32, i32
  }
  func.func @transform_4(%arg0: i32) -> (i32, i32) {
    %c0_i32 = arith.constant 0 : i32
    %c0_i32_0 = arith.constant 0 : i32
    %c0_i32_1 = arith.constant 0 : i32
    return %c0_i32, %c0_i32_0 : i32, i32
  }
  func.func @transform_5(%arg0: i32) -> (i32, i32) {
    %c0_i32 = arith.constant 0 : i32
    %c0_i32_0 = arith.constant 0 : i32
    %c0_i32_1 = arith.constant 0 : i32
    return %c0_i32, %c0_i32_0 : i32, i32
  }
  func.func @transform_6(%arg0: i32) -> (i32, i32) {
    %c0_i32 = arith.constant 0 : i32
    %c0_i32_0 = arith.constant 0 : i32
    %c0_i32_1 = arith.constant 0 : i32
    return %c0_i32, %c0_i32_0 : i32, i32
  }
  func.func @transform_7(%arg0: i32) -> (i32, i32) {
    %c0_i32 = arith.constant 0 : i32
    %c0_i32_0 = arith.constant 0 : i32
    return %c0_i32, %arg0 : i32, i32
  }
}

</mosaic_0001>

<llo_original>
// kernel: tpu_custom_call.1
$region0: #{tpu_custom_call.1}
  #allocation0 [shape = 'u32[]', space=smem, size = 0x4, offset = 0x4, fixed_abs, tag = 'smem constant byte address 0x4 - core index']
  #allocation1 [shape = 'u32[144,128]{1,0:T(1,128)}', space=vmem, size = 0x12000, scoped, tag = 'internal scratch']
  %s0 = inlined_call_operand.vmem [shape: f32[5,384], index: 0, kind: input, shape index: {}]
  %s1 = inlined_call_operand.hbm [shape: f32[8,5], index: 1, kind: input, shape index: {}]
  %s2 = inlined_call_operand.vmem [shape: f32[8,8], index: 2, kind: input, shape index: {}]
  %s3 = inlined_call_operand.hbm [shape: f32[8,8], index: 3, kind: input, shape index: {}]
  %s4 = inlined_call_operand.vmem [shape: f32[8,1], index: 4, kind: input, shape index: {}]
  %s5 = inlined_call_operand.vmem [shape: f32[8,1], index: 5, kind: input, shape index: {}]
  %s6 = inlined_call_operand.vmem [shape: f32[8,1], index: 6, kind: input, shape index: {}]
  %s7 = inlined_call_operand.hbm [shape: f32[2,384], index: 7, kind: output, shape index: {}]
  %s8 = sld [smem:[#allocation0]]
  $region69: #{tpu_custom_call.1} parent=0
    _
  %s10 = ssub.s32 1, %s8
  %s11 = scalar_select 0, %s10, %s8
  $region1: #{tpu_custom_call.1} parent=0
    #allocation2 [shape = 'u8[4096]{0}', space=vmem, size = 0x1000, scoped, tag = 'input window, operand 1, single buffered']
    #allocation3 [shape = 's32[2]{0}', space=sflag, size = 0x8, scoped, tag = 'scoped memory for tpu_custom_call.1']
    #allocation4 [shape = 's32[2]{0}', space=sflag, size = 0x8, scoped, tag = 'scoped memory for tpu_custom_call.1']
    #allocation5 [shape = 'u8[4096]{0}', space=vmem, size = 0x1000, scoped, tag = 'input window, operand 3, single buffered']
    #allocation6 [shape = 's32[1]{0}', space=sflag, size = 0x4, scoped, tag = 'scoped memory for tpu_custom_call.1']
    #allocation7 [shape = 'u8[2048]{0}', space=vmem, size = 0x800, scoped, tag = 'output window, operand 0']
    %12 = vsyncpa [#allocation3], 0
    %13 = vsyncpa [#allocation6], 0
    %14 = vsyncpa [#allocation4], 0
    %s15 = scalar_lea.sflag [#allocation4], 1
    %16 = vsyncpa %s15, 0
    loop: start=0, step=1, limit=5
    $region2: #{tpu_custom_call.1} parent=1 // loop_pre_header
      _
    $region3: #{tpu_custom_call.1} parent=1 // loop_header
      %s18 = sphi 0, %s22
      %p19 = scmp.ge.s32.totalorder %s18, 5
      %s28 = sphi 0, %s30
      %s31 = sphi 0, %s28
      %s32 = sphi 0, %s31
      %s48 = sphi 0, %s32
      %s52 = sphi 0, %s52
      %s54 = sphi 0, %s52
      %s55 = sphi 0, %s54
      %s69 = sphi 0, %s55
      %s73 = sphi 0, %s73
      %s75 = sphi 0, %s73
      %s76 = sphi 0, %s75
      %s90 = sphi 0, %s76
      %s94 = sphi 0, %s94
      %s96 = sphi 0, %s94
      %s97 = sphi 0, %s96
      %s111 = sphi 0, %s97
      %s115 = sphi 0, %s115
      %s117 = sphi 0, %s115
      %s118 = sphi 0, %s117
      %s132 = sphi 0, %s118
      %s136 = sphi 0, %s136
      %s138 = sphi 0, %s136
      %s139 = sphi 0, %s138
      %s153 = sphi 0, %s139
      %s157 = sphi 0, %s157
      %s159 = sphi 0, %s157
      %s160 = sphi 0, %s159
      %s174 = sphi 0, %s160
      %s180 = sphi 0, %s182
      %s183 = sphi 0, %s180
      %s184 = sphi 0, %s183
      %s200 = sphi 0, %s184
    $region4: #{tpu_custom_call.1} parent=1 // loop_header_branch
      %21 = sbr.rel (%p19) target = $region8
    $region5: #{tpu_custom_call.1} parent=1 // loop_body
      %s23 = ssub.s32 %s18, 1
      %s24 = ssub.s32 %s18, 2
      %s25 = sadd.s32 %s18, 1
      %s26 = ssub.s32 %s18, %s25
      %p27 = scmp.eq.s32.totalorder %s26, 0
      %s29 = sadd.s32 %s28, 1
      %s30 = scalar_select %p27, %s28, %s29
      %p33 = pneg %p27
      %p34 = scmp.eq.s32.totalorder %s18, 2
      %p35 = por %p33, %p34
      %p36 = scmp.ne.s32.totalorder %s28, %s31
      %p37 = scmp.eq.s32.totalorder %s18, 0
      %p38 = por %p36, %p37
      %p39 = scmp.ne.s32.totalorder %s28, %s31
      %p40 = scmp.eq.s32.totalorder %s23, 2
      %p41 = por %p39, %p40
      %p42 = scmp.ne.s32.totalorder %s31, %s32
      %p43 = scmp.eq.s32.totalorder %s23, 0
      %p44 = por %p42, %p43
      %p45 = scmp.ne.s32.totalorder %s31, %s32
      %p46 = scmp.eq.s32.totalorder %s24, 2
      %p47 = por %p45, %p46
      %p49 = scmp.ne.s32.totalorder %s32, %s48
      %p50 = scmp.eq.s32.totalorder %s24, 0
      %p51 = por %p49, %p50
      %s53 = sadd.s32 %s52, 1
      %p56 = scmp.eq.s32.totalorder %s18, 2
      %p57 = scmp.ne.s32.totalorder %s52, %s54
      %p58 = scmp.eq.s32.totalorder %s18, 0
      %p59 = por %p57, %p58
      %p60 = scmp.ne.s32.totalorder %s52, %s54
      %p61 = scmp.eq.s32.totalorder %s23, 2
      %p62 = por %p60, %p61
      %p63 = scmp.ne.s32.totalorder %s54, %s55
      %p64 = scmp.eq.s32.totalorder %s23, 0
      %p65 = por %p63, %p64
      %p66 = scmp.ne.s32.totalorder %s54, %s55
      %p67 = scmp.eq.s32.totalorder %s24, 2
      %p68 = por %p66, %p67
      %p70 = scmp.ne.s32.totalorder %s55, %s69
      %p71 = scmp.eq.s32.totalorder %s24, 0
      %p72 = por %p70, %p71
      %s74 = sadd.s32 %s73, 1
      %p77 = scmp.eq.s32.totalorder %s18, 2
      %p78 = scmp.ne.s32.totalorder %s73, %s75
      %p79 = scmp.eq.s32.totalorder %s18, 0
      %p80 = por %p78, %p79
      %p81 = scmp.ne.s32.totalorder %s73, %s75
      %p82 = scmp.eq.s32.totalorder %s23, 2
      %p83 = por %p81, %p82
      %p84 = scmp.ne.s32.totalorder %s75, %s76
      %p85 = scmp.eq.s32.totalorder %s23, 0
      %p86 = por %p84, %p85
      %p87 = scmp.ne.s32.totalorder %s75, %s76
      %p88 = scmp.eq.s32.totalorder %s24, 2
      %p89 = por %p87, %p88
      %p91 = scmp.ne.s32.totalorder %s76, %s90
      %p92 = scmp.eq.s32.totalorder %s24, 0
      %p93 = por %p91, %p92
      %s95 = sadd.s32 %s94, 1
      %p98 = scmp.eq.s32.totalorder %s18, 2
      %p99 = scmp.ne.s32.totalorder %s94, %s96
      %p100 = scmp.eq.s32.totalorder %s18, 0
      %p101 = por %p99, %p100
      %p102 = scmp.ne.s32.totalorder %s94, %s96
      %p103 = scmp.eq.s32.totalorder %s23, 2
      %p104 = por %p102, %p103
      %p105 = scmp.ne.s32.totalorder %s96, %s97
      %p106 = scmp.eq.s32.totalorder %s23, 0
      %p107 = por %p105, %p106
      %p108 = scmp.ne.s32.totalorder %s96, %s97
      %p109 = scmp.eq.s32.totalorder %s24, 2
      %p110 = por %p108, %p109
      %p112 = scmp.ne.s32.totalorder %s97, %s111
      %p113 = scmp.eq.s32.totalorder %s24, 0
      %p114 = por %p112, %p113
      %s116 = sadd.s32 %s115, 1
      %p119 = scmp.eq.s32.totalorder %s18, 2
      %p120 = scmp.ne.s32.totalorder %s115, %s117
      %p121 = scmp.eq.s32.totalorder %s18, 0
      %p122 = por %p120, %p121
      %p123 = scmp.ne.s32.totalorder %s115, %s117
      %p124 = scmp.eq.s32.totalorder %s23, 2
      %p125 = por %p123, %p124
      %p126 = scmp.ne.s32.totalorder %s117, %s118
      %p127 = scmp.eq.s32.totalorder %s23, 0
      %p128 = por %p126, %p127
      %p129 = scmp.ne.s32.totalorder %s117, %s118
      %p130 = scmp.eq.s32.totalorder %s24, 2
      %p131 = por %p129, %p130
      %p133 = scmp.ne.s32.totalorder %s118, %s132
      %p134 = scmp.eq.s32.totalorder %s24, 0
      %p135 = por %p133, %p134
      %s137 = sadd.s32 %s136, 1
      %p140 = scmp.eq.s32.totalorder %s18, 2
      %p141 = scmp.ne.s32.totalorder %s136, %s138
      %p142 = scmp.eq.s32.totalorder %s18, 0
      %p143 = por %p141, %p142
      %p144 = scmp.ne.s32.totalorder %s136, %s138
      %p145 = scmp.eq.s32.totalorder %s23, 2
      %p146 = por %p144, %p145
      %p147 = scmp.ne.s32.totalorder %s138, %s139
      %p148 = scmp.eq.s32.totalorder %s23, 0
      %p149 = por %p147, %p148
      %p150 = scmp.ne.s32.totalorder %s138, %s139
      %p151 = scmp.eq.s32.totalorder %s24, 2
      %p152 = por %p150, %p151
      %p154 = scmp.ne.s32.totalorder %s139, %s153
      %p155 = scmp.eq.s32.totalorder %s24, 0
      %p156 = por %p154, %p155
      %s158 = sadd.s32 %s157, 1
      %p161 = scmp.eq.s32.totalorder %s18, 2
      %p162 = scmp.ne.s32.totalorder %s157, %s159
      %p163 = scmp.eq.s32.totalorder %s18, 0
      %p164 = por %p162, %p163
      %p165 = scmp.ne.s32.totalorder %s157, %s159
      %p166 = scmp.eq.s32.totalorder %s23, 2
      %p167 = por %p165, %p166
      %p168 = scmp.ne.s32.totalorder %s159, %s160
      %p169 = scmp.eq.s32.totalorder %s23, 0
      %p170 = por %p168, %p169
      %p171 = scmp.ne.s32.totalorder %s159, %s160
      %p172 = scmp.eq.s32.totalorder %s24, 2
      %p173 = por %p171, %p172
      %p175 = scmp.ne.s32.totalorder %s160, %s174
      %p176 = scmp.eq.s32.totalorder %s24, 0
      %p177 = por %p175, %p176
      %s178 = ssub.s32 %s18, %s25
      %p179 = scmp.eq.s32.totalorder %s178, 0
      %s181 = sadd.s32 %s180, 1
      %s182 = scalar_select %p179, %s180, %s181
      %p185 = pneg %p179
      %p186 = scmp.eq.s32.totalorder %s18, 2
      %p187 = por %p185, %p186
      %p188 = scmp.ne.s32.totalorder %s180, %s183
      %p189 = scmp.eq.s32.totalorder %s18, 0
      %p190 = por %p188, %p189
      %p191 = scmp.ne.s32.totalorder %s180, %s183
      %p192 = scmp.eq.s32.totalorder %s23, 2
      %p193 = por %p191, %p192
      %p194 = scmp.ne.s32.totalorder %s183, %s184
      %p195 = scmp.eq.s32.totalorder %s23, 0
      %p196 = por %p194, %p195
      %p197 = scmp.ne.s32.totalorder %s183, %s184
      %p198 = scmp.eq.s32.totalorder %s24, 2
      %p199 = por %p197, %p198
      %p201 = scmp.ne.s32.totalorder %s184, %s200
      %p202 = scmp.eq.s32.totalorder %s24, 0
      %p203 = por %p201, %p202
      %p204 = scmp.le.s32.totalorder 1, %s18
      %p205 = scmp.lt.s32.totalorder %s18, 4
      %p206 = pnand %p204, %p205
      %p207 = pneg %p206
      // Predicated region
      $region9: #{tpu_custom_call.1} parent=5 // pred_check
        _
      $region10: #{tpu_custom_call.1} parent=5 // pred_check_branch
        %209 = sbr.rel (%p206) target = $region12
      $region11: #{tpu_custom_call.1} parent=5 // pred_region
        %s210 = ssub.s32 %s18, 1
        // Predicated region
        $region13: #{tpu_custom_call.1} parent=11 // pred_check
          %p211 = pneg %p65
        $region14: #{tpu_custom_call.1} parent=11 // pred_check_branch
          %213 = sbr.rel (%p211) target = $region16
        $region15: #{tpu_custom_call.1} parent=11 // pred_region
          %s215 = ssub.s32 128, 128
          %216 = vsyncadd [#allocation3], %s215
          %s218 = sshll.u32 [#allocation2], 4
          %s219 = int_to_ptr.vmem [resolvable:$true] %s218
          %221 = dma.hbm_to_vmem [thread:$0]  %s1, 128, %s219, [#allocation3]
        $region16: #{tpu_custom_call.1} parent=11 // pred_fallthru
          _
        // Predicated region
        $region17: #{tpu_custom_call.1} parent=11 // pred_check
          %p222 = pneg %p86
        $region18: #{tpu_custom_call.1} parent=11 // pred_check_branch
          %224 = sbr.rel (%p222) target = $region20
        $region19: #{tpu_custom_call.1} parent=11 // pred_region
          _
        $region20: #{tpu_custom_call.1} parent=11 // pred_fallthru
          _
        // Predicated region
        $region21: #{tpu_custom_call.1} parent=11 // pred_check
          %p225 = pneg %p107
        $region22: #{tpu_custom_call.1} parent=11 // pred_check_branch
          %227 = sbr.rel (%p225) target = $region24
        $region23: #{tpu_custom_call.1} parent=11 // pred_region
          %s229 = ssub.s32 128, 128
          %230 = vsyncadd [#allocation6], %s229
          %s232 = sshll.u32 [#allocation5], 4
          %s233 = int_to_ptr.vmem [resolvable:$true] %s232
          %235 = dma.hbm_to_vmem [thread:$0]  %s3, 128, %s233, [#allocation6]
        $region24: #{tpu_custom_call.1} parent=11 // pred_fallthru
          _
        // Predicated region
        $region25: #{tpu_custom_call.1} parent=11 // pred_check
          %p236 = pneg %p128
        $region26: #{tpu_custom_call.1} parent=11 // pred_check_branch
          %238 = sbr.rel (%p236) target = $region28
        $region27: #{tpu_custom_call.1} parent=11 // pred_region
          _
        $region28: #{tpu_custom_call.1} parent=11 // pred_fallthru
          _
        // Predicated region
        $region29: #{tpu_custom_call.1} parent=11 // pred_check
          %p239 = pneg %p149
        $region30: #{tpu_custom_call.1} parent=11 // pred_check_branch
          %241 = sbr.rel (%p239) target = $region32
        $region31: #{tpu_custom_call.1} parent=11 // pred_region
          _
        $region32: #{tpu_custom_call.1} parent=11 // pred_fallthru
          _
        // Predicated region
        $region33: #{tpu_custom_call.1} parent=11 // pred_check
          %p242 = pneg %p170
        $region34: #{tpu_custom_call.1} parent=11 // pred_check_branch
          %244 = sbr.rel (%p242) target = $region36
        $region35: #{tpu_custom_call.1} parent=11 // pred_region
          _
        $region36: #{tpu_custom_call.1} parent=11 // pred_fallthru
          _
      $region12: #{tpu_custom_call.1} parent=5 // pred_fallthru
        _
      %p245 = scmp.lt.s32.totalorder %s18, 3
      // Predicated region
      $region37: #{tpu_custom_call.1} parent=5 // pred_check
        %p246 = pneg %p245
      $region38: #{tpu_custom_call.1} parent=5 // pred_check_branch
        %248 = sbr.rel (%p246) target = $region40
      $region39: #{tpu_custom_call.1} parent=5 // pred_region
        // Predicated region
        $region41: #{tpu_custom_call.1} parent=39 // pred_check
          %p249 = pneg %p38
        $region42: #{tpu_custom_call.1} parent=39 // pred_check_branch
          %251 = sbr.rel (%p249) target = $region44
        $region43: #{tpu_custom_call.1} parent=39 // pred_region
          %p252 = scmp.lt.s32.totalorder %s18, 2
          %s253 = scalar_select %p252, %s18, 2
          %s254 = smul.addr %s253, 8
          %s255 = scalar_lea.vmem %s0, %s254
        $region44: #{tpu_custom_call.1} parent=39 // pred_fallthru
          _
      $region40: #{tpu_custom_call.1} parent=5 // pred_fallthru
        _
      %p256 = scmp.le.s32.totalorder 1, %s18
      %p257 = scmp.lt.s32.totalorder %s18, 4
      %p258 = pnand %p256, %p257
      %p259 = pneg %p258
      // Predicated region
      $region45: #{tpu_custom_call.1} parent=5 // pred_check
        _
      $region46: #{tpu_custom_call.1} parent=5 // pred_check_branch
        %261 = sbr.rel (%p258) target = $region48
      $region47: #{tpu_custom_call.1} parent=5 // pred_region
        %s262 = ssub.s32 %s18, 1
        // Predicated region
        $region49: #{tpu_custom_call.1} parent=47 // pred_check
          %p263 = pneg %p65
        $region50: #{tpu_custom_call.1} parent=47 // pred_check_branch
          %265 = sbr.rel (%p263) target = $region52
        $region51: #{tpu_custom_call.1} parent=47 // pred_region
          %266 = dma.done [#allocation3], 128
        $region52: #{tpu_custom_call.1} parent=47 // pred_fallthru
          _
        // Predicated region
        $region53: #{tpu_custom_call.1} parent=47 // pred_check
          %p267 = pneg %p107
        $region54: #{tpu_custom_call.1} parent=47 // pred_check_branch
          %269 = sbr.rel (%p267) target = $region56
        $region55: #{tpu_custom_call.1} parent=47 // pred_region
          %270 = dma.done [#allocation6], 128
        $region56: #{tpu_custom_call.1} parent=47 // pred_fallthru
          _
        %p271 = scmp.lt.s32.totalorder %s23, 2
        %s272 = scalar_select %p271, %s23, 2
        %s273 = smul.addr %s272, 8
        %s274 = scalar_lea.vmem %s0, %s273
        %p275 = pneg %p44
        %p276 = pneg %p41
        %p277 = pneg %p65
        %p278 = pneg %p62
        %p279 = pneg %p86
        %p280 = pneg %p83
        %p281 = pneg %p107
        %p282 = pneg %p104
        %p283 = pneg %p128
        %p284 = pneg %p125
        %p285 = pneg %p149
        %p286 = pneg %p146
        %p287 = pneg %p170
        %p288 = pneg %p167
        %p289 = pneg %p196
        %p290 = pneg %p193
        %s291 = sand.u32 %s183, 1
        %s292 = scalar_lea.sflag [#allocation4], %s291
        %s293 = sand.u32 %s183, 1
        %s294 = smul.addr %s293, 2
        %s295 = scalar_lea.vmem [#allocation7], %s294
        %p296 = scmp.lt.s32.totalorder %s23, 2
        %s297 = scalar_select %p296, %s23, 2
        %s298 = smul.addr %s297, 8
        %s299 = scalar_lea.vmem %s0, %s298
        %v300 = vld [vmem:[%s299] sm:$0x1f]
        %v301 = vld [vmem:[#allocation2] sm:$0xff]
        %v302 = vld [vmem:[%s4] sm:$0xff]
        %304 = vset.pattern.permute.xlu0 0
        %305 = vperm.xlu0 %304, %v302
        %v306 = vpop.permute.xlu0 %305
        %vm308 = vcmask 39936
        %v310 = vsel %vm308, %v301, 0
        %vm312 = vcmask 1044480
        %v314 = vsel %vm312, %v300, 0
        %316 = vmatprep.subr.mxu0 0.0
        %317 = vmatpush1.msra.mxu0 %v314
        %318 = vmatprep.subr.mxu0 0.0
        %319 = vmatpush1.msra.mxu0 0.0
        %320 = vmatprep.subr.mxu0 0.0
        %321 = vmatpush1.msra.mxu0 0.0
        %322 = vmatprep.subr.mxu0 0.0
        %323 = vmatpush1.msra.mxu0 0.0
        %324 = vmatprep.subr.mxu0 0.0
        %325 = vmatpush1.msra.mxu0 0.0
        %326 = vmatprep.subr.mxu0 0.0
        %327 = vmatpush1.msra.mxu0 0.0
        %328 = vmatprep.subr.mxu0 0.0
        %329 = vmatpush1.msra.mxu0 0.0
        %330 = vmatprep.subr.mxu0 0.0
        %331 = vmatpush1.msra.mxu0 0.0
        %332 = vmatprep.subr.mxu0 0.0
        %333 = vmatpush1.msra.mxu0 0.0
        %334 = vmatprep.subr.mxu0 0.0
        %335 = vmatpush1.msra.mxu0 0.0
        %336 = vmatprep.subr.mxu0 0.0
        %337 = vmatpush1.msra.mxu0 0.0
        %338 = vmatprep.subr.mxu0 0.0
        %339 = vmatpush1.msra.mxu0 0.0
        %340 = vmatprep.subr.mxu0 0.0
        %341 = vmatpush1.msra.mxu0 0.0
        %342 = vmatprep.subr.mxu0 0.0
        %343 = vmatpush1.msra.mxu0 0.0
        %344 = vmatprep.subr.mxu0 0.0
        %345 = vmatpush1.msra.mxu0 0.0
        %346 = vmatprep.subr.mxu0 0.0
        %347 = vmatpush1.msra.mxu0 0.0
        %348 = vmatprep.subr.mxu0 0.0
        %349 = vmatpush1.msra.mxu0 0.0
        %350 = vmatprep.subr.mxu0 0.0
        %351 = vmatpush1.msra.mxu0 0.0
        %352 = vmatprep.subr.mxu0 0.0
        %353 = vmatpush1.msra.mxu0 0.0
        %354 = vmatprep.subr.mxu0 0.0
        %355 = vmatpush1.msra.mxu0 0.0
        %356 = vmatprep.subr.mxu0 0.0
        %357 = vmatpush1.msra.mxu0 0.0
        %358 = vmatprep.subr.mxu0 0.0
        %359 = vmatpush1.msra.mxu0 0.0
        %360 = vmatprep.subr.mxu0 0.0
        %361 = vmatpush1.msra.mxu0 0.0
        %362 = vmatprep.subr.mxu0 0.0
        %363 = vmatpush1.msra.mxu0 0.0
        %364 = vmatprep.subr.mxu0 0.0
        %365 = vmatpush1.msra.mxu0 0.0
        %366 = vmatprep.subr.mxu0 0.0
        %367 = vmatpush1.msra.mxu0 0.0
        %368 = vmatprep.subr.mxu0 0.0
        %369 = vmatpush1.msra.mxu0 0.0
        %370 = vmatprep.subr.mxu0 0.0
        %371 = vmatpush1.msra.mxu0 0.0
        %372 = vmatprep.subr.mxu0 0.0
        %373 = vmatpush1.msra.mxu0 0.0
        %374 = vmatprep.subr.mxu0 0.0
        %375 = vmatpush1.msra.mxu0 0.0
        %376 = vmatprep.subr.mxu0 0.0
        %377 = vmatpush1.msra.mxu0 0.0
        %378 = vmatprep.subr.mxu0 0.0
        %379 = vmatpush1.msra.mxu0 0.0
        %380 = vmatprep.mubr.f32.mxu0 0.0
        %381 = vmatmul.mubr.f32.gmra.mrb[0].mxu0 %v310
        %v382 = vpop.f32.mrb[0].mxu0
        %v383 = vadd.f32 %v306, %v382
        %v384 = vpop.f32.mrb[0].mxu0
        %385 = vdwg.mxu0
        %vm386 = vcmp.gt.f32.partialorder %v383, 0.0
        %v387 = vmul.f32 %v383, 0.01
        %v388 = vsel %vm386, %v383, %v387
        %v389 = vld [vmem:[%s2] sm:$0xff]
        %v390 = vld [vmem:[%s5] sm:$0xff]
        %392 = vset.pattern.permute.xlu0 0
        %393 = vperm.xlu0 %392, %v390
        %v394 = vpop.permute.xlu0 %393
        %vm396 = vcmask 64512
        %v398 = vsel %vm396, %v389, 0
        %400 = vmatprep.subr.mxu0 0.0
        %401 = vmatpush1.msra.mxu0 %v388
        %402 = vmatprep.subr.mxu0 0.0
        %403 = vmatpush1.msra.mxu0 0.0
        %404 = vmatprep.subr.mxu0 0.0
        %405 = vmatpush1.msra.mxu0 0.0
        %406 = vmatprep.subr.mxu0 0.0
        %407 = vmatpush1.msra.mxu0 0.0
        %408 = vmatprep.subr.mxu0 0.0
        %409 = vmatpush1.msra.mxu0 0.0
        %410 = vmatprep.subr.mxu0 0.0
        %411 = vmatpush1.msra.mxu0 0.0
        %412 = vmatprep.subr.mxu0 0.0
        %413 = vmatpush1.msra.mxu0 0.0
        %414 = vmatprep.subr.mxu0 0.0
        %415 = vmatpush1.msra.mxu0 0.0
        %416 = vmatprep.subr.mxu0 0.0
        %417 = vmatpush1.msra.mxu0 0.0
        %418 = vmatprep.subr.mxu0 0.0
        %419 = vmatpush1.msra.mxu0 0.0
        %420 = vmatprep.subr.mxu0 0.0
        %421 = vmatpush1.msra.mxu0 0.0
        %422 = vmatprep.subr.mxu0 0.0
        %423 = vmatpush1.msra.mxu0 0.0
        %424 = vmatprep.subr.mxu0 0.0
        %425 = vmatpush1.msra.mxu0 0.0
        %426 = vmatprep.subr.mxu0 0.0
        %427 = vmatpush1.msra.mxu0 0.0
        %428 = vmatprep.subr.mxu0 0.0
        %429 = vmatpush1.msra.mxu0 0.0
        %430 = vmatprep.subr.mxu0 0.0
        %431 = vmatpush1.msra.mxu0 0.0
        %432 = vmatprep.subr.mxu0 0.0
        %433 = vmatpush1.msra.mxu0 0.0
        %434 = vmatprep.subr.mxu0 0.0
        %435 = vmatpush1.msra.mxu0 0.0
        %436 = vmatprep.subr.mxu0 0.0
        %437 = vmatpush1.msra.mxu0 0.0
        %438 = vmatprep.subr.mxu0 0.0
        %439 = vmatpush1.msra.mxu0 0.0
        %440 = vmatprep.subr.mxu0 0.0
        %441 = vmatpush1.msra.mxu0 0.0
        %442 = vmatprep.subr.mxu0 0.0
        %443 = vmatpush1.msra.mxu0 0.0
        %444 = vmatprep.subr.mxu0 0.0
        %445 = vmatpush1.msra.mxu0 0.0
        %446 = vmatprep.subr.mxu0 0.0
        %447 = vmatpush1.msra.mxu0 0.0
        %448 = vmatprep.subr.mxu0 0.0
        %449 = vmatpush1.msra.mxu0 0.0
        %450 = vmatprep.subr.mxu0 0.0
        %451 = vmatpush1.msra.mxu0 0.0
        %452 = vmatprep.subr.mxu0 0.0
        %453 = vmatpush1.msra.mxu0 0.0
        %454 = vmatprep.subr.mxu0 0.0
        %455 = vmatpush1.msra.mxu0 0.0
        %456 = vmatprep.subr.mxu0 0.0
        %457 = vmatpush1.msra.mxu0 0.0
        %458 = vmatprep.subr.mxu0 0.0
        %459 = vmatpush1.msra.mxu0 0.0
        %460 = vmatprep.subr.mxu0 0.0
        %461 = vmatpush1.msra.mxu0 0.0
        %462 = vmatprep.subr.mxu0 0.0
        %463 = vmatpush1.msra.mxu0 0.0
        %464 = vmatprep.mubr.f32.mxu0 0.0
        %465 = vmatmul.mubr.f32.gmra.mrb[0].mxu0 %v398
        %v466 = vpop.f32.mrb[0].mxu0
        %v467 = vadd.f32 %v394, %v466
        %v468 = vpop.f32.mrb[0].mxu0
        %469 = vdwg.mxu0
        %vm470 = vcmp.gt.f32.partialorder %v467, 0.0
        %v471 = vmul.f32 %v467, 0.01
        %v472 = vsel %vm470, %v467, %v471
        %v473 = vld [vmem:[#allocation5] sm:$0xff]
        %v474 = vld [vmem:[%s6] sm:$0xff]
        %476 = vset.pattern.permute.xlu0 0
        %477 = vperm.xlu0 %476, %v474
        %v478 = vpop.permute.xlu0 %477
        %v481 = vsel %vm396, %v473, 0
        %483 = vmatprep.subr.mxu0 0.0
        %484 = vmatpush1.msra.mxu0 %v472
        %485 = vmatprep.subr.mxu0 0.0
        %486 = vmatpush1.msra.mxu0 0.0
        %487 = vmatprep.subr.mxu0 0.0
        %488 = vmatpush1.msra.mxu0 0.0
        %489 = vmatprep.subr.mxu0 0.0
        %490 = vmatpush1.msra.mxu0 0.0
        %491 = vmatprep.subr.mxu0 0.0
        %492 = vmatpush1.msra.mxu0 0.0
        %493 = vmatprep.subr.mxu0 0.0
        %494 = vmatpush1.msra.mxu0 0.0
        %495 = vmatprep.subr.mxu0 0.0
        %496 = vmatpush1.msra.mxu0 0.0
        %497 = vmatprep.subr.mxu0 0.0
        %498 = vmatpush1.msra.mxu0 0.0
        %499 = vmatprep.subr.mxu0 0.0
        %500 = vmatpush1.msra.mxu0 0.0
        %501 = vmatprep.subr.mxu0 0.0
        %502 = vmatpush1.msra.mxu0 0.0
        %503 = vmatprep.subr.mxu0 0.0
        %504 = vmatpush1.msra.mxu0 0.0
        %505 = vmatprep.subr.mxu0 0.0
        %506 = vmatpush1.msra.mxu0 0.0
        %507 = vmatprep.subr.mxu0 0.0
        %508 = vmatpush1.msra.mxu0 0.0
        %509 = vmatprep.subr.mxu0 0.0
        %510 = vmatpush1.msra.mxu0 0.0
        %511 = vmatprep.subr.mxu0 0.0
        %512 = vmatpush1.msra.mxu0 0.0
        %513 = vmatprep.subr.mxu0 0.0
        %514 = vmatpush1.msra.mxu0 0.0
        %515 = vmatprep.subr.mxu0 0.0
        %516 = vmatpush1.msra.mxu0 0.0
        %517 = vmatprep.subr.mxu0 0.0
        %518 = vmatpush1.msra.mxu0 0.0
        %519 = vmatprep.subr.mxu0 0.0
        %520 = vmatpush1.msra.mxu0 0.0
        %521 = vmatprep.subr.mxu0 0.0
        %522 = vmatpush1.msra.mxu0 0.0
        %523 = vmatprep.subr.mxu0 0.0
        %524 = vmatpush1.msra.mxu0 0.0
        %525 = vmatprep.subr.mxu0 0.0
        %526 = vmatpush1.msra.mxu0 0.0
        %527 = vmatprep.subr.mxu0 0.0
        %528 = vmatpush1.msra.mxu0 0.0
        %529 = vmatprep.subr.mxu0 0.0
        %530 = vmatpush1.msra.mxu0 0.0
        %531 = vmatprep.subr.mxu0 0.0
        %532 = vmatpush1.msra.mxu0 0.0
        %533 = vmatprep.subr.mxu0 0.0
        %534 = vmatpush1.msra.mxu0 0.0
        %535 = vmatprep.subr.mxu0 0.0
        %536 = vmatpush1.msra.mxu0 0.0
        %537 = vmatprep.subr.mxu0 0.0
        %538 = vmatpush1.msra.mxu0 0.0
        %539 = vmatprep.subr.mxu0 0.0
        %540 = vmatpush1.msra.mxu0 0.0
        %541 = vmatprep.subr.mxu0 0.0
        %542 = vmatpush1.msra.mxu0 0.0
        %543 = vmatprep.subr.mxu0 0.0
        %544 = vmatpush1.msra.mxu0 0.0
        %545 = vmatprep.subr.mxu0 0.0
        %546 = vmatpush1.msra.mxu0 0.0
        %547 = vmatprep.mubr.f32.mxu0 0.0
        %548 = vmatmul.mubr.f32.gmra.mrb[0].mxu0 %v481
        %v549 = vpop.f32.mrb[0].mxu0
        %v550 = vadd.f32 %v478, %v549
        %v551 = vpop.f32.mrb[0].mxu0
        %552 = vdwg.mxu0
        %553 = vst [vmem:[%s295] sm:$0x3] %v550
        %s554 = sand.u32 %s183, 1
        %s555 = scalar_lea.sflag [#allocation4], %s554
        %s556 = sand.u32 %s183, 1
        %s557 = smul.addr %s556, 2
        %s558 = scalar_lea.vmem [#allocation7], %s557
        // Predicated region
        $region57: #{tpu_custom_call.1} parent=47 // pred_check
          %p559 = pneg %p193
        $region58: #{tpu_custom_call.1} parent=47 // pred_check_branch
          %561 = sbr.rel (%p559) target = $region60
        $region59: #{tpu_custom_call.1} parent=47 // pred_region
          %s563 = ssub.s32 32, 32
          %564 = vsyncadd %s555, %s563
          %s565 = smul.addr %s23, 32
          %s566 = scalar_lea.hbm %s7, %s565
          %s568 = sshll.u32 %s558, 4
          %s569 = int_to_ptr.vmem [resolvable:$true] %s568
          %571 = dma.vmem_to_hbm [thread:$0]  %s569, 32, %s566, %s555
        $region60: #{tpu_custom_call.1} parent=47 // pred_fallthru
          _
      $region48: #{tpu_custom_call.1} parent=5 // pred_fallthru
        _
      %p572 = scmp.le.s32.totalorder 2, %s18
      // Predicated region
      $region61: #{tpu_custom_call.1} parent=5 // pred_check
        %p573 = pneg %p572
      $region62: #{tpu_custom_call.1} parent=5 // pred_check_branch
        %575 = sbr.rel (%p573) target = $region64
      $region63: #{tpu_custom_call.1} parent=5 // pred_region
        %s576 = ssub.s32 %s18, 2
        // Predicated region
        $region65: #{tpu_custom_call.1} parent=63 // pred_check
          %p577 = pneg %p199
        $region66: #{tpu_custom_call.1} parent=63 // pred_check_branch
          %579 = sbr.rel (%p577) target = $region68
        $region67: #{tpu_custom_call.1} parent=63 // pred_region
          %s580 = sand.u32 %s184, 1
          %s581 = scalar_lea.sflag [#allocation4], %s580
          %s582 = sand.u32 %s184, 1
          %s583 = smul.addr %s582, 2
          %s584 = scalar_lea.vmem [#allocation7], %s583
          %585 = dma.done %s581, 32
        $region68: #{tpu_custom_call.1} parent=63 // pred_fallthru
          _
      $region64: #{tpu_custom_call.1} parent=5 // pred_fallthru
        _
    $region6: #{tpu_custom_call.1} parent=1 // loop_footer
      %s22 = sadd.s32 1, %s18
    $region7: #{tpu_custom_call.1} parent=1 // loop_footer_branch
      %17 = sbr.rel target = $region3
    $region8: #{tpu_custom_call.1} parent=1 // loop_exit
      _
    %586 = vsyncpa [#allocation3], 1
    %s587 = scalar_lea.sflag [#allocation3], 1
    %588 = vsyncpa %s587, 1
    %589 = vsyncpa [#allocation6], 1
    %590 = vsyncpa [#allocation4], 1
    %s591 = scalar_lea.sflag [#allocation4], 1
    %592 = vsyncpa %s591, 1

</llo_original>
